<compile_context>
chip_gen: v7x
topology: tpu7x:2x2x1
jax: 0.10.0
libtpu: 0.0.40
codegen_flags: <defaults>
</compile_context>

<pallas_src>
import jax
import jax.numpy as jnp
from jax.experimental import pallas as pl
from jax.experimental.pallas import tpu as pltpu

OUTPUT_DIM = 24                      # MyDBL output dim
IN_FEAT = 36                         # per-stream input dim
N_DBL = 3
X_ROWS = (N_DBL + 1) * IN_FEAT       # 144: fused [fx | f1 | f2 | f3] feature rows
F_ROWS = N_DBL * OUTPUT_DIM          # 72 : hstack(f1', f2', f3') rows (MLP input)
Z_ROWS = 2 * F_ROWS                  # 144: [zx ; zi] rows of the fused DBL matmul
MLP_H1, MLP_H2, MLP_OUT = 32, 16, 3
B_ROWS = Z_ROWS + MLP_H1 + MLP_H2 + MLP_OUT   # 195 packed bias rows


def _round_up(x, m):
    return ((x + m - 1) // m) * m


# ----------------------------------------------------------------------------
# Kernel (feature-major: everything is (features, batch_tile))
# ----------------------------------------------------------------------------
def dblanet_kernel(x_ref, w_ref, b_ref, mw1_ref, mw2_ref, mw3_ref, out_ref):
    compute_dtype = w_ref.dtype
    b = b_ref[...]                                            # (195, 1) f32

    # Fused DBL stage: one matmul replaces all six reference linears.
    #   z[:72]   = [W1x|W2x|W3x]^T @ fx^T            (zx, feature-major)
    #   z[72:]   = blockdiag(Wi)^T @ [f1|f2|f3]^T    (zi, feature-major)
    z = jnp.dot(w_ref[...], x_ref[...], preferred_element_type=jnp.float32)
    z = z + b[0:Z_ROWS]
    # f' = hstack(f1', f2', f3') in feature-major layout -> (72, tile_b).
    f_prime = (jnp.tanh(z[0:F_ROWS]) * jnp.tanh(z[F_ROWS:Z_ROWS]))
    f_prime = f_prime.astype(compute_dtype)

    # MLP 72 -> 32 -> 16 -> 3 (weights as LHS; f32 accumulate; ReLU in f32).
    h = jnp.dot(mw1_ref[...], f_prime, preferred_element_type=jnp.float32)
    h = jnp.maximum(h + b[Z_ROWS:Z_ROWS + MLP_H1], 0.0).astype(compute_dtype)
    h = jnp.dot(mw2_ref[...], h, preferred_element_type=jnp.float32)
    h = jnp.maximum(h + b[Z_ROWS + MLP_H1:Z_ROWS + MLP_H1 + MLP_H2],
                    0.0).astype(compute_dtype)
    o = jnp.dot(mw3_ref[...], h, preferred_element_type=jnp.float32)
    out_ref[...] = (o + b[Z_ROWS + MLP_H1 + MLP_H2:]).astype(out_ref.dtype)


# ----------------------------------------------------------------------------
# Parameters
# ----------------------------------------------------------------------------
def init_linear(key, in_f, out_f):
    """Deterministic init mimicking torch.nn.Linear default U(-k, k), k=1/sqrt(in)."""
    kw, kb = jax.random.split(key)
    k = 1.0 / jnp.sqrt(jnp.float32(in_f))
    w = jax.random.uniform(kw, (in_f, out_f), jnp.float32, -k, k)   # (in, out)
    b = jax.random.uniform(kb, (1, out_f), jnp.float32, -k, k)      # (1, out)
    return w, b


def init_params(seed=0):
    keys = jax.random.split(jax.random.PRNGKey(seed), 9)
    p = {}
    p["w1x"], p["b1x"] = init_linear(keys[0], IN_FEAT, OUTPUT_DIM)
    p["w1i"], p["b1i"] = init_linear(keys[1], IN_FEAT, OUTPUT_DIM)
    p["w2x"], p["b2x"] = init_linear(keys[2], IN_FEAT, OUTPUT_DIM)
    p["w2i"], p["b2i"] = init_linear(keys[3], IN_FEAT, OUTPUT_DIM)
    p["w3x"], p["b3x"] = init_linear(keys[4], IN_FEAT, OUTPUT_DIM)
    p["w3i"], p["b3i"] = init_linear(keys[5], IN_FEAT, OUTPUT_DIM)
    p["mw1"], p["mb1"] = init_linear(keys[6], F_ROWS, MLP_H1)
    p["mw2"], p["mb2"] = init_linear(keys[7], MLP_H1, MLP_H2)
    p["mw3"], p["mb3"] = init_linear(keys[8], MLP_H2, MLP_OUT)
    return p


def pack_params(p, compute_dtype=jnp.bfloat16):
    """Fuse the six DBL linears into one (144,144) feature-major weight and pack
    all biases into a single (195,1) f32 vector.  Done once, wrapper side."""
    wx_t = jnp.concatenate([p["w1x"], p["w2x"], p["w3x"]], axis=1).T     # (72, 36)
    w = jnp.zeros((Z_ROWS, X_ROWS), jnp.float32)
    w = w.at[0:F_ROWS, 0:IN_FEAT].set(wx_t)
    for j, name in enumerate(("w1i", "w2i", "w3i")):
        r0 = F_ROWS + j * OUTPUT_DIM
        c0 = IN_FEAT + j * IN_FEAT
        w = w.at[r0:r0 + OUTPUT_DIM, c0:c0 + IN_FEAT].set(p[name].T)

    bx_t = jnp.concatenate([p["b1x"], p["b2x"], p["b3x"]], axis=1).T     # (72, 1)
    bi_t = jnp.concatenate([p["b1i"], p["b2i"], p["b3i"]], axis=1).T     # (72, 1)
    b_all = jnp.concatenate(
        [bx_t, bi_t, p["mb1"].T, p["mb2"].T, p["mb3"].T], axis=0)        # (195, 1)

    return {
        "w": w.astype(compute_dtype),              # (144, 144)
        "b": b_all.astype(jnp.float32),            # (195, 1)
        "mw1": p["mw1"].T.astype(compute_dtype),   # (32, 72)
        "mw2": p["mw2"].T.astype(compute_dtype),   # (16, 32)
        "mw3": p["mw3"].T.astype(compute_dtype),   # (3, 16)
    }


# ----------------------------------------------------------------------------
# Wrapper
# ----------------------------------------------------------------------------
def _pick_tile_b(batch, requested):
    tile = max(128, (int(requested) // 128) * 128)      # multiple of 128 lanes
    b128 = _round_up(max(int(batch), 1), 128)
    tile = min(tile, b128)
    # Keep >= 2 grid steps when the batch allows it (v7x megacore sharding,
    # better pipelining); harmless on single-TC chips.
    if b128 >= 256:
        tile = min(tile, max(128, (b128 // 2) // 128 * 128))
    return tile


def dblanet_forward(fx, f1, f2, f3, packed, *, tile_b=4096):
    compute_dtype = packed["w"].dtype
    B = fx.shape[0]

    # Single fused, feature-major input: (144, B).  Rows: fx | f1 | f2 | f3.
    x = jnp.concatenate([fx, f1, f2, f3], axis=1).astype(compute_dtype).T

    tile = _pick_tile_b(B, tile_b)
    num_tiles = pl.cdiv(B, tile)
    pad_b = num_tiles * tile
    if pad_b != B:
        x = jnp.pad(x, ((0, 0), (0, pad_b - B)))

    args = (x, packed["w"], packed["b"], packed["mw1"], packed["mw2"], packed["mw3"])

    in_specs = [pl.BlockSpec((X_ROWS, tile), lambda i: (0, i))]
    in_specs += [pl.BlockSpec(a.shape, lambda i: (0, 0)) for a in args[1:]]

    in_bytes = jnp.dtype(compute_dtype).itemsize
    weight_bytes = sum(int(a.size) * a.dtype.itemsize for a in args[1:])
    cost = pl.CostEstimate(
        flops=2 * pad_b * (X_ROWS * Z_ROWS + F_ROWS * MLP_H1
                           + MLP_H1 * MLP_H2 + MLP_H2 * MLP_OUT),
        transcendentals=Z_ROWS * pad_b,
        bytes_accessed=pad_b * X_ROWS * in_bytes + pad_b * MLP_OUT * 4 + weight_bytes)

    out_t = pl.pallas_call(
        dblanet_kernel,
        grid=(num_tiles,),
        out_shape=jax.ShapeDtypeStruct((MLP_OUT, pad_b), jnp.float32),
        in_specs=in_specs,
        out_specs=pl.BlockSpec((MLP_OUT, tile), lambda i: (0, i)),
        compiler_params=pltpu.CompilerParams(
            dimension_semantics=("parallel",),
            vmem_limit_bytes=48 * 1024 * 1024),
        cost_estimate=cost,
    )(*args)
    return out_t[:, :B].T                                   # back to (B, 3)


# ----------------------------------------------------------------------------
# Pure-JAX reference (mirrors the PyTorch forward, batch > 1 case)
# ----------------------------------------------------------------------------
def dblanet_reference(fx, f1, f2, f3, p):
    def dbl(fi, wx, bx, wi, bi):
        return jnp.tanh(fx @ wx + bx) * jnp.tanh(fi @ wi + bi)
    f1p = dbl(f1, p["w1x"], p["b1x"], p["w1i"], p["b1i"])
    f2p = dbl(f2, p["w2x"], p["b2x"], p["w2i"], p["b2i"])
    f3p = dbl(f3, p["w3x"], p["b3x"], p["w3i"], p["b3i"])
    ff = jnp.concatenate([f1p, f2p, f3p], axis=1)            # torch.hstack, batch > 1
    h = jnp.maximum(ff @ p["mw1"] + p["mb1"], 0.0)
    h = jnp.maximum(h @ p["mw2"] + p["mb2"], 0.0)
    return h @ p["mw3"] + p["mb3"]


if __name__ == "__main__":
    params = init_params(seed=0)

    # --- small batch, f32 debug path (tight correctness check) --------------
    B = 8
    kx, k1, k2, k3 = jax.random.split(jax.random.PRNGKey(0), 4)
    fx = jax.random.normal(kx, (B, IN_FEAT), jnp.float32)
    f1 = jax.random.normal(k1, (B, IN_FEAT), jnp.float32)
    f2 = jax.random.normal(k2, (B, IN_FEAT), jnp.float32)
    f3 = jax.random.normal(k3, (B, IN_FEAT), jnp.float32)

    packed_f32 = pack_params(params, jnp.float32)
    out = jax.block_until_ready(dblanet_forward(fx, f1, f2, f3, packed_f32))
    ref = dblanet_reference(fx, f1, f2, f3, params)
    assert out.shape == (B, MLP_OUT)
    assert jnp.allclose(out, ref, atol=1e-5, rtol=1e-5), "f32 mismatch vs reference"

    # --- ragged multi-tile batch, f32 (exercises grid + padding path) -------
    B2 = 1000
    kx2, k12, k22, k32 = jax.random.split(jax.random.PRNGKey(1), 4)
    fx2 = jax.random.normal(kx2, (B2, IN_FEAT), jnp.float32)
    f12 = jax.random.normal(k12, (B2, IN_FEAT), jnp.float32)
    f22 = jax.random.normal(k22, (B2, IN_FEAT), jnp.float32)
    f32_ = jax.random.normal(k32, (B2, IN_FEAT), jnp.float32)
    out2 = jax.block_until_ready(
        dblanet_forward(fx2, f12, f22, f32_, packed_f32, tile_b=256))
    ref2 = dblanet_reference(fx2, f12, f22, f32_, params)
    assert out2.shape == (B2, MLP_OUT)
    assert jnp.allclose(out2, ref2, atol=1e-4, rtol=1e-4), "tiled f32 mismatch"

    # --- default bf16 path, larger multi-tile batch (megacore-friendly) -----
    B3 = 4096
    kx3, k13, k23, k33 = jax.random.split(jax.random.PRNGKey(2), 4)
    fx3 = jax.random.normal(kx3, (B3, IN_FEAT), jnp.float32)
    f13 = jax.random.normal(k13, (B3, IN_FEAT), jnp.float32)
    f23 = jax.random.normal(k23, (B3, IN_FEAT), jnp.float32)
    f33 = jax.random.normal(k33, (B3, IN_FEAT), jnp.float32)

    packed_bf16 = pack_params(params)                         # bf16 default
    out3 = jax.block_until_ready(dblanet_forward(fx3, f13, f23, f33, packed_bf16))
    # Reference with the same bf16 rounding applied to weights and inputs.
    params_bf = {k: (v.astype(jnp.bfloat16).astype(jnp.float32)
                     if k.startswith(("w", "mw")) else v)
                 for k, v in params.items()}
    bf = lambda a: a.astype(jnp.bfloat16).astype(jnp.float32)
    ref3 = dblanet_reference(bf(fx3), bf(f13), bf(f23), bf(f33), params_bf)
    assert out3.shape == (B3, MLP_OUT)
    assert jnp.allclose(out3, ref3, atol=1e-1, rtol=1e-1), "bf16 mismatch"

    print("KERNEL_OK")
</pallas_src>

<mosaic_0001>
module attributes {stable_mosaic.version = 11 : i64} {
  func.func @dblanet_kernel(%arg0: i32, %arg1: memref<144x128xf32, #tpu.memory_space<vmem>>, %arg2: memref<144x144xf32, #tpu.memory_space<vmem>>, %arg3: memref<195x1xf32, #tpu.memory_space<vmem>>, %arg4: memref<32x72xf32, #tpu.memory_space<vmem>>, %arg5: memref<16x32xf32, #tpu.memory_space<vmem>>, %arg6: memref<3x16xf32, #tpu.memory_space<vmem>>, %arg7: memref<3x128xf32, #tpu.memory_space<vmem>>) attributes {dimension_semantics = [#tpu.dimension_semantics<parallel>], iteration_bounds = array<i64: 1>, scalar_prefetch = 0 : i64, scratch_operands = 0 : i64, tpu.core_type = #tpu.core_type<tc>, window_params = [{transform_indices = @transform_0, window_bounds = array<i64: 144, 128>}, {pipeline_mode = #tpu.pipeline_mode<synchronous>, transform_indices = @transform_1, window_bounds = array<i64: 144, 144>}, {pipeline_mode = #tpu.pipeline_mode<synchronous>, transform_indices = @transform_2, window_bounds = array<i64: 195, 1>}, {pipeline_mode = #tpu.pipeline_mode<synchronous>, transform_indices = @transform_3, window_bounds = array<i64: 32, 72>}, {pipeline_mode = #tpu.pipeline_mode<synchronous>, transform_indices = @transform_4, window_bounds = array<i64: 16, 32>}, {pipeline_mode = #tpu.pipeline_mode<synchronous>, transform_indices = @transform_5, window_bounds = array<i64: 3, 16>}, {transform_indices = @transform_6, window_bounds = array<i64: 3, 128>}]} {
    %c0 = arith.constant 0 : index
    %c0_0 = arith.constant 0 : index
    %0 = vector.load %arg3[%c0, %c0_0] : memref<195x1xf32, #tpu.memory_space<vmem>>, vector<195x1xf32>
    %c0_1 = arith.constant 0 : index
    %c0_2 = arith.constant 0 : index
    %1 = vector.load %arg2[%c0_1, %c0_2] : memref<144x144xf32, #tpu.memory_space<vmem>>, vector<144x144xf32>
    %c0_3 = arith.constant 0 : index
    %c0_4 = arith.constant 0 : index
    %2 = vector.load %arg1[%c0_3, %c0_4] : memref<144x128xf32, #tpu.memory_space<vmem>>, vector<144x128xf32>
    %cst = arith.constant dense<0.000000e+00> : vector<144x128xf32>
    %3 = tpu.matmul %1, %2, %cst {dimension_numbers = #tpu.dot_dimension_numbers<[1], [0], [0], [1], [0, 0, 1, 1], [], []>} : vector<144x144xf32>, vector<144x128xf32>, vector<144x128xf32> -> vector<144x128xf32>
    %4 = vector.extract_strided_slice %0 {offsets = [0, 0], sizes = [144, 1], strides = [1, 1]} : vector<195x1xf32> to vector<144x1xf32>
    %5 = vector.broadcast %4 : vector<144x1xf32> to vector<144x128xf32>
    %6 = arith.addf %3, %5 : vector<144x128xf32>
    %7 = vector.extract_strided_slice %6 {offsets = [0, 0], sizes = [72, 128], strides = [1, 1]} : vector<144x128xf32> to vector<72x128xf32>
    %8 = math.tanh %7 : vector<72x128xf32>
    %9 = vector.extract_strided_slice %6 {offsets = [72, 0], sizes = [72, 128], strides = [1, 1]} : vector<144x128xf32> to vector<72x128xf32>
    %10 = math.tanh %9 : vector<72x128xf32>
    %11 = arith.mulf %8, %10 : vector<72x128xf32>
    %c0_5 = arith.constant 0 : index
    %c0_6 = arith.constant 0 : index
    %12 = vector.load %arg4[%c0_5, %c0_6] : memref<32x72xf32, #tpu.memory_space<vmem>>, vector<32x72xf32>
    %cst_7 = arith.constant dense<0.000000e+00> : vector<32x128xf32>
    %13 = tpu.matmul %12, %11, %cst_7 {dimension_numbers = #tpu.dot_dimension_numbers<[1], [0], [0], [1], [0, 0, 1, 1], [], []>} : vector<32x72xf32>, vector<72x128xf32>, vector<32x128xf32> -> vector<32x128xf32>
    %14 = vector.extract_strided_slice %0 {offsets = [144, 0], sizes = [32, 1], strides = [1, 1]} : vector<195x1xf32> to vector<32x1xf32>
    %15 = vector.broadcast %14 : vector<32x1xf32> to vector<32x128xf32>
    %16 = arith.addf %13, %15 : vector<32x128xf32>
    %cst_8 = arith.constant 0.000000e+00 : f32
    %17 = vector.broadcast %cst_8 : f32 to vector<32x128xf32>
    %18 = arith.maximumf %16, %17 : vector<32x128xf32>
    %c0_9 = arith.constant 0 : index
    %c0_10 = arith.constant 0 : index
    %19 = vector.load %arg5[%c0_9, %c0_10] : memref<16x32xf32, #tpu.memory_space<vmem>>, vector<16x32xf32>
    %cst_11 = arith.constant dense<0.000000e+00> : vector<16x128xf32>
    %20 = tpu.matmul %19, %18, %cst_11 {dimension_numbers = #tpu.dot_dimension_numbers<[1], [0], [0], [1], [0, 0, 1, 1], [], []>} : vector<16x32xf32>, vector<32x128xf32>, vector<16x128xf32> -> vector<16x128xf32>
    %21 = vector.extract_strided_slice %0 {offsets = [176, 0], sizes = [16, 1], strides = [1, 1]} : vector<195x1xf32> to vector<16x1xf32>
    %22 = vector.broadcast %21 : vector<16x1xf32> to vector<16x128xf32>
    %23 = arith.addf %20, %22 : vector<16x128xf32>
    %cst_12 = arith.constant 0.000000e+00 : f32
    %24 = vector.broadcast %cst_12 : f32 to vector<16x128xf32>
    %25 = arith.maximumf %23, %24 : vector<16x128xf32>
    %c0_13 = arith.constant 0 : index
    %c0_14 = arith.constant 0 : index
    %26 = vector.load %arg6[%c0_13, %c0_14] : memref<3x16xf32, #tpu.memory_space<vmem>>, vector<3x16xf32>
    %cst_15 = arith.constant dense<0.000000e+00> : vector<3x128xf32>
    %27 = tpu.matmul %26, %25, %cst_15 {dimension_numbers = #tpu.dot_dimension_numbers<[1], [0], [0], [1], [0, 0, 1, 1], [], []>} : vector<3x16xf32>, vector<16x128xf32>, vector<3x128xf32> -> vector<3x128xf32>
    %28 = vector.extract_strided_slice %0 {offsets = [192, 0], sizes = [3, 1], strides = [1, 1]} : vector<195x1xf32> to vector<3x1xf32>
    %29 = vector.broadcast %28 : vector<3x1xf32> to vector<3x128xf32>
    %30 = arith.addf %27, %29 : vector<3x128xf32>
    %c0_16 = arith.constant 0 : index
    %c0_17 = arith.constant 0 : index
    %31 = vector.load %arg7[%c0_16, %c0_17] : memref<3x128xf32, #tpu.memory_space<vmem>>, vector<3x128xf32>
    tpu.vector_store %arg7[%c0_16, %c0_17], %30 {strides = array<i32>} : memref<3x128xf32, #tpu.memory_space<vmem>>, vector<3x128xf32>,
    return
  }
  func.func @transform_0(%arg0: i32) -> (i32, i32) {
    %c0_i32 = arith.constant 0 : i32
    %c0_i32_0 = arith.constant 0 : i32
    return %c0_i32, %arg0 : i32, i32
  }
  func.func @transform_1(%arg0: i32) -> (i32, i32) {
    %c0_i32 = arith.constant 0 : i32
    %c0_i32_0 = arith.constant 0 : i32
    %c0_i32_1 = arith.constant 0 : i32
    return %c0_i32, %c0_i32_0 : i32, i32
  }
  func.func @transform_2(%arg0: i32) -> (i32, i32) {
    %c0_i32 = arith.constant 0 : i32
    %c0_i32_0 = arith.constant 0 : i32
    %c0_i32_1 = arith.constant 0 : i32
    return %c0_i32, %c0_i32_0 : i32, i32
  }
  func.func @transform_3(%arg0: i32) -> (i32, i32) {
    %c0_i32 = arith.constant 0 : i32
    %c0_i32_0 = arith.constant 0 : i32
    %c0_i32_1 = arith.constant 0 : i32
    return %c0_i32, %c0_i32_0 : i32, i32
  }
  func.func @transform_4(%arg0: i32) -> (i32, i32) {
    %c0_i32 = arith.constant 0 : i32
    %c0_i32_0 = arith.constant 0 : i32
    %c0_i32_1 = arith.constant 0 : i32
    return %c0_i32, %c0_i32_0 : i32, i32
  }
  func.func @transform_5(%arg0: i32) -> (i32, i32) {
    %c0_i32 = arith.constant 0 : i32
    %c0_i32_0 = arith.constant 0 : i32
    %c0_i32_1 = arith.constant 0 : i32
    return %c0_i32, %c0_i32_0 : i32, i32
  }
  func.func @transform_6(%arg0: i32) -> (i32, i32) {
    %c0_i32 = arith.constant 0 : i32
    %c0_i32_0 = arith.constant 0 : i32
    return %c0_i32, %arg0 : i32, i32
  }
}

</mosaic_0001>

<llo_original>
// kernel: tpu_custom_call.1
$region0: #{tpu_custom_call.1}
  #allocation0 [shape = 'u32[]', space=smem, size = 0x4, offset = 0x4, fixed_abs, tag = 'smem constant byte address 0x4 - core index']
  #allocation1 [shape = 'u32[144,128]{1,0:T(1,128)}', space=vmem, size = 0x12000, scoped, tag = 'internal scratch']
  %s0 = inlined_call_operand.vmem [shape: f32[144,128], index: 0, kind: input, shape index: {}]
  %s1 = inlined_call_operand.hbm [shape: f32[144,144], index: 1, kind: input, shape index: {}]
  %s2 = inlined_call_operand.vmem [shape: f32[195,1], index: 2, kind: input, shape index: {}]
  %s3 = inlined_call_operand.vmem [shape: f32[32,72], index: 3, kind: input, shape index: {}]
  %s4 = inlined_call_operand.vmem [shape: f32[16,32], index: 4, kind: input, shape index: {}]
  %s5 = inlined_call_operand.vmem [shape: f32[3,16], index: 5, kind: input, shape index: {}]
  %s6 = inlined_call_operand.hbm [shape: f32[3,128], index: 6, kind: output, shape index: {}]
  %s7 = sld [smem:[#allocation0]]
  $region38: #{tpu_custom_call.1} parent=0
    _
  %s9 = ssub.s32 1, %s7
  %s10 = scalar_select 0, %s9, %s7
  $region1: #{tpu_custom_call.1} parent=0
    #allocation2 [shape = 'u8[147456]{0}', space=vmem, size = 0x24000, scoped, tag = 'input window, operand 1, single buffered']
    #allocation3 [shape = 's32[1]{0}', space=sflag, size = 0x4, scoped, tag = 'scoped memory for tpu_custom_call.1']
    #allocation4 [shape = 's32[1]{0}', space=sflag, size = 0x4, scoped, tag = 'scoped memory for tpu_custom_call.1']
    #allocation5 [shape = 'u8[2048]{0}', space=vmem, size = 0x800, scoped, tag = 'output window, operand 0, single buffered']
    %11 = vsyncpa [#allocation3], 0
    %12 = vsyncpa [#allocation4], 0
    // Predicated region
    $region2: #{tpu_custom_call.1} parent=1 // pred_check
      _
    $region3: #{tpu_custom_call.1} parent=1 // pred_check_branch
      %14 = sbr.rel (0) target = $region5
    $region4: #{tpu_custom_call.1} parent=1 // pred_region
      _
    $region5: #{tpu_custom_call.1} parent=1 // pred_fallthru
      _
    // Predicated region
    $region6: #{tpu_custom_call.1} parent=1 // pred_check
      _
    $region7: #{tpu_custom_call.1} parent=1 // pred_check_branch
      %16 = sbr.rel (0) target = $region9
    $region8: #{tpu_custom_call.1} parent=1 // pred_region
      %s18 = ssub.s32 4608, 4608
      %19 = vsyncadd [#allocation3], %s18
      %s20 = sshll.u32 [#allocation2], 4
      %s21 = int_to_ptr.vmem [resolvable:$true] %s20
      %26 = dma.hbm_to_vmem [thread:$0]  %s1, 4608, %s21, [#allocation3], 256, 256, 16
    $region9: #{tpu_custom_call.1} parent=1 // pred_fallthru
      _
    // Predicated region
    $region10: #{tpu_custom_call.1} parent=1 // pred_check
      _
    $region11: #{tpu_custom_call.1} parent=1 // pred_check_branch
      %28 = sbr.rel (0) target = $region13
    $region12: #{tpu_custom_call.1} parent=1 // pred_region
      _
    $region13: #{tpu_custom_call.1} parent=1 // pred_fallthru
      _
    // Predicated region
    $region14: #{tpu_custom_call.1} parent=1 // pred_check
      _
    $region15: #{tpu_custom_call.1} parent=1 // pred_check_branch
      %30 = sbr.rel (0) target = $region17
    $region16: #{tpu_custom_call.1} parent=1 // pred_region
      _
    $region17: #{tpu_custom_call.1} parent=1 // pred_fallthru
      _
    // Predicated region
    $region18: #{tpu_custom_call.1} parent=1 // pred_check
      _
    $region19: #{tpu_custom_call.1} parent=1 // pred_check_branch
      %32 = sbr.rel (0) target = $region21
    $region20: #{tpu_custom_call.1} parent=1 // pred_region
      _
    $region21: #{tpu_custom_call.1} parent=1 // pred_fallthru
      _
    // Predicated region
    $region22: #{tpu_custom_call.1} parent=1 // pred_check
      _
    $region23: #{tpu_custom_call.1} parent=1 // pred_check_branch
      %34 = sbr.rel (0) target = $region25
    $region24: #{tpu_custom_call.1} parent=1 // pred_region
      _
    $region25: #{tpu_custom_call.1} parent=1 // pred_fallthru
      _
    // Predicated region
    $region26: #{tpu_custom_call.1} parent=1 // pred_check
      _
    $region27: #{tpu_custom_call.1} parent=1 // pred_check_branch
      %36 = sbr.rel (0) target = $region29
    $region28: #{tpu_custom_call.1} parent=1 // pred_region
      %37 = dma.done [#allocation3], 4608
    $region29: #{tpu_custom_call.1} parent=1 // pred_fallthru
      _
    %v38 = vld [vmem:[%s2] sm:$0xff]
    %v39 = vld [vmem:[%s2 + $0x8] sm:$0xff]
    %v40 = vld [vmem:[%s2 + $0x10] sm:$0xff]
    %v41 = vld [vmem:[%s2 + $0x18] sm:$0xff]
    %v42 = vld [vmem:[%s2 + $0x20] sm:$0xff]
    %v43 = vld [vmem:[%s2 + $0x28] sm:$0xff]
    %v44 = vld [vmem:[%s2 + $0x30] sm:$0xff]
    %v45 = vld [vmem:[%s2 + $0x38] sm:$0xff]
    %v46 = vld [vmem:[%s2 + $0x40] sm:$0xff]
    %v47 = vld [vmem:[%s2 + $0x48] sm:$0xff]
    %v48 = vld [vmem:[%s2 + $0x50] sm:$0xff]
    %v49 = vld [vmem:[%s2 + $0x58] sm:$0xff]
    %v50 = vld [vmem:[%s2 + $0x60] sm:$0xff]
    %v51 = vld [vmem:[%s2 + $0x68] sm:$0xff]
    %v52 = vld [vmem:[%s2 + $0x70] sm:$0xff]
    %v53 = vld [vmem:[%s2 + $0x78] sm:$0xff]
    %v54 = vld [vmem:[%s2 + $0x80] sm:$0xff]
    %v55 = vld [vmem:[%s2 + $0x88] sm:$0xff]
    %v56 = vld [vmem:[%s2 + $0x90] sm:$0xff]
    %v57 = vld [vmem:[%s2 + $0x98] sm:$0xff]
    %v58 = vld [vmem:[%s2 + $0xa0] sm:$0xff]
    %v59 = vld [vmem:[%s2 + $0xa8] sm:$0xff]
    %v60 = vld [vmem:[%s2 + $0xb0] sm:$0xff]
    %v61 = vld [vmem:[%s2 + $0xb8] sm:$0xff]
    %v62 = vld [vmem:[%s2 + $0xc0] sm:$0x7]
    %v63 = vld [vmem:[#allocation2] sm:$0xff]
    %v64 = vld [vmem:[#allocation2 + $0x8] sm:$0xff]
    %v65 = vld [vmem:[#allocation2 + $0x10] sm:$0xff]
    %v66 = vld [vmem:[#allocation2 + $0x18] sm:$0xff]
    %v67 = vld [vmem:[#allocation2 + $0x20] sm:$0xff]
    %v68 = vld [vmem:[#allocation2 + $0x28] sm:$0xff]
    %v69 = vld [vmem:[#allocation2 + $0x30] sm:$0xff]
    %v70 = vld [vmem:[#allocation2 + $0x38] sm:$0xff]
    %v71 = vld [vmem:[#allocation2 + $0x40] sm:$0xff]
    %v72 = vld [vmem:[#allocation2 + $0x48] sm:$0xff]
    %v73 = vld [vmem:[#allocation2 + $0x50] sm:$0xff]
    %v74 = vld [vmem:[#allocation2 + $0x58] sm:$0xff]
    %v75 = vld [vmem:[#allocation2 + $0x60] sm:$0xff]
    %v76 = vld [vmem:[#allocation2 + $0x68] sm:$0xff]
    %v77 = vld [vmem:[#allocation2 + $0x70] sm:$0xff]
    %v78 = vld [vmem:[#allocation2 + $0x78] sm:$0xff]
    %v79 = vld [vmem:[#allocation2 + $0x80] sm:$0xff]
    %v80 = vld [vmem:[#allocation2 + $0x88] sm:$0xff]
    %v81 = vld [vmem:[#allocation2 + $0x90] sm:$0xff]
    %v82 = vld [vmem:[#allocation2 + $0x98] sm:$0xff]
    %v83 = vld [vmem:[#allocation2 + $0xa0] sm:$0xff]
    %v84 = vld [vmem:[#allocation2 + $0xa8] sm:$0xff]
    %v85 = vld [vmem:[#allocation2 + $0xb0] sm:$0xff]
    %v86 = vld [vmem:[#allocation2 + $0xb8] sm:$0xff]
    %v87 = vld [vmem:[#allocation2 + $0xc0] sm:$0xff]
    %v88 = vld [vmem:[#allocation2 + $0xc8] sm:$0xff]
    %v89 = vld [vmem:[#allocation2 + $0xd0] sm:$0xff]
    %v90 = vld [vmem:[#allocation2 + $0xd8] sm:$0xff]
    %v91 = vld [vmem:[#allocation2 + $0xe0] sm:$0xff]
    %v92 = vld [vmem:[#allocation2 + $0xe8] sm:$0xff]
    %v93 = vld [vmem:[#allocation2 + $0xf0] sm:$0xff]
    %v94 = vld [vmem:[#allocation2 + $0xf8] sm:$0xff]
    %v95 = vld [vmem:[#allocation2 + $0x100] sm:$0xff]
    %v96 = vld [vmem:[#allocation2 + $0x108] sm:$0xff]
    %v97 = vld [vmem:[#allocation2 + $0x110] sm:$0xff]
    %v98 = vld [vmem:[#allocation2 + $0x118] sm:$0xff]
    %v99 = vld [vmem:[%s0] sm:$0xff]
    %v100 = vld [vmem:[%s0 + $0x8] sm:$0xff]
    %v101 = vld [vmem:[%s0 + $0x10] sm:$0xff]
    %v102 = vld [vmem:[%s0 + $0x18] sm:$0xff]
    %v103 = vld [vmem:[%s0 + $0x20] sm:$0xff]
    %v104 = vld [vmem:[%s0 + $0x28] sm:$0xff]
    %v105 = vld [vmem:[%s0 + $0x30] sm:$0xff]
    %v106 = vld [vmem:[%s0 + $0x38] sm:$0xff]
    %v107 = vld [vmem:[%s0 + $0x40] sm:$0xff]
    %v108 = vld [vmem:[%s0 + $0x48] sm:$0xff]
    %v109 = vld [vmem:[%s0 + $0x50] sm:$0xff]
    %v110 = vld [vmem:[%s0 + $0x58] sm:$0xff]
    %v111 = vld [vmem:[%s0 + $0x60] sm:$0xff]
    %v112 = vld [vmem:[%s0 + $0x68] sm:$0xff]
    %v113 = vld [vmem:[%s0 + $0x70] sm:$0xff]
    %v114 = vld [vmem:[%s0 + $0x78] sm:$0xff]
    %v115 = vld [vmem:[%s0 + $0x80] sm:$0xff]
    %v116 = vld [vmem:[%s0 + $0x88] sm:$0xff]
    %118 = vset.pattern.permute.xlu0 0
    %119 = vperm.xlu0 %118, %v38
    %v120 = vpop.permute.xlu0 %119
    %123 = vset.pattern.permute.xlu0 0
    %124 = vperm.xlu0 %123, %v39
    %v125 = vpop.permute.xlu0 %124
    %128 = vset.pattern.permute.xlu0 0
    %129 = vperm.xlu0 %128, %v40
    %v130 = vpop.permute.xlu0 %129
    %133 = vset.pattern.permute.xlu0 0
    %134 = vperm.xlu0 %133, %v41
    %v135 = vpop.permute.xlu0 %134
    %138 = vset.pattern.permute.xlu0 0
    %139 = vperm.xlu0 %138, %v42
    %v140 = vpop.permute.xlu0 %139
    %143 = vset.pattern.permute.xlu0 0
    %144 = vperm.xlu0 %143, %v43
    %v145 = vpop.permute.xlu0 %144
    %148 = vset.pattern.permute.xlu0 0
    %149 = vperm.xlu0 %148, %v44
    %v150 = vpop.permute.xlu0 %149
    %153 = vset.pattern.permute.xlu0 0
    %154 = vperm.xlu0 %153, %v45
    %v155 = vpop.permute.xlu0 %154
    %158 = vset.pattern.permute.xlu0 0
    %159 = vperm.xlu0 %158, %v46
    %v160 = vpop.permute.xlu0 %159
    %163 = vset.pattern.permute.xlu0 0
    %164 = vperm.xlu0 %163, %v47
    %v165 = vpop.permute.xlu0 %164
    %168 = vset.pattern.permute.xlu0 0
    %169 = vperm.xlu0 %168, %v48
    %v170 = vpop.permute.xlu0 %169
    %173 = vset.pattern.permute.xlu0 0
    %174 = vperm.xlu0 %173, %v49
    %v175 = vpop.permute.xlu0 %174
    %178 = vset.pattern.permute.xlu0 0
    %179 = vperm.xlu0 %178, %v50
    %v180 = vpop.permute.xlu0 %179
    %183 = vset.pattern.permute.xlu0 0
    %184 = vperm.xlu0 %183, %v51
    %v185 = vpop.permute.xlu0 %184
    %188 = vset.pattern.permute.xlu0 0
    %189 = vperm.xlu0 %188, %v52
    %v190 = vpop.permute.xlu0 %189
    %193 = vset.pattern.permute.xlu0 0
    %194 = vperm.xlu0 %193, %v53
    %v195 = vpop.permute.xlu0 %194
    %198 = vset.pattern.permute.xlu0 0
    %199 = vperm.xlu0 %198, %v54
    %v200 = vpop.permute.xlu0 %199
    %203 = vset.pattern.permute.xlu0 0
    %204 = vperm.xlu0 %203, %v55
    %v205 = vpop.permute.xlu0 %204
    %vm207 = vcmask 130048
    %v209 = vsel %vm207, %v64, 0
    %v212 = vsel %vm207, %v66, 0
    %v215 = vsel %vm207, %v68, 0
    %v218 = vsel %vm207, %v70, 0
    %v221 = vsel %vm207, %v72, 0
    %v224 = vsel %vm207, %v74, 0
    %v227 = vsel %vm207, %v76, 0
    %v230 = vsel %vm207, %v78, 0
    %v233 = vsel %vm207, %v80, 0
    %v236 = vsel %vm207, %v82, 0
    %v239 = vsel %vm207, %v84, 0
    %v242 = vsel %vm207, %v86, 0
    %v245 = vsel %vm207, %v88, 0
    %v248 = vsel %vm207, %v90, 0
    %v251 = vsel %vm207, %v92, 0
    %v254 = vsel %vm207, %v94, 0
    %v257 = vsel %vm207, %v96, 0
    %v260 = vsel %vm207, %v98, 0
    %262 = vmatprep.subr.mxu0 0.0
    %263 = vmatpush1.msra.mxu0 %v99
    %264 = vmatprep.subr.mxu0 0.0
    %265 = vmatpush1.msra.mxu0 %v100
    %266 = vmatprep.subr.mxu0 0.0
    %267 = vmatpush1.msra.mxu0 %v101
    %268 = vmatprep.subr.mxu0 0.0
    %269 = vmatpush1.msra.mxu0 %v102
    %270 = vmatprep.subr.mxu0 0.0
    %271 = vmatpush1.msra.mxu0 %v103
    %272 = vmatprep.subr.mxu0 0.0
    %273 = vmatpush1.msra.mxu0 %v104
    %274 = vmatprep.subr.mxu0 0.0
    %275 = vmatpush1.msra.mxu0 %v105
    %276 = vmatprep.subr.mxu0 0.0
    %277 = vmatpush1.msra.mxu0 %v106
    %278 = vmatprep.subr.mxu0 0.0
    %279 = vmatpush1.msra.mxu0 %v107
    %280 = vmatprep.subr.mxu0 0.0
    %281 = vmatpush1.msra.mxu0 %v108
    %282 = vmatprep.subr.mxu0 0.0
    %283 = vmatpush1.msra.mxu0 %v109
    %284 = vmatprep.subr.mxu0 0.0
    %285 = vmatpush1.msra.mxu0 %v110
    %286 = vmatprep.subr.mxu0 0.0
    %287 = vmatpush1.msra.mxu0 %v111
    %288 = vmatprep.subr.mxu0 0.0
    %289 = vmatpush1.msra.mxu0 %v112
    %290 = vmatprep.subr.mxu0 0.0
    %291 = vmatpush1.msra.mxu0 %v113
    %292 = vmatprep.subr.mxu0 0.0
    %293 = vmatpush1.msra.mxu0 %v114
    %294 = vmatprep.subr.mxu0 0.0
    %295 = vmatpush1.msra.mxu0 %v115
    %296 = vmatprep.subr.mxu0 0.0
    %297 = vmatpush1.msra.mxu0 %v116
    %298 = vmatprep.subr.mxu0 0.0
    %299 = vmatpush1.msra.mxu0 0.0
    %300 = vmatprep.subr.mxu0 0.0
    %301 = vmatpush1.msra.mxu0 0.0
    %302 = vmatprep.subr.mxu0 0.0
    %303 = vmatpush1.msra.mxu0 0.0
    %304 = vmatprep.subr.mxu0 0.0
    %305 = vmatpush1.msra.mxu0 0.0
    %306 = vmatprep.subr.mxu0 0.0
    %307 = vmatpush1.msra.mxu0 0.0
    %308 = vmatprep.subr.mxu0 0.0
    %309 = vmatpush1.msra.mxu0 0.0
    %310 = vmatprep.subr.mxu0 0.0
    %311 = vmatpush1.msra.mxu0 0.0
    %312 = vmatprep.subr.mxu0 0.0
    %313 = vmatpush1.msra.mxu0 0.0
    %314 = vmatprep.subr.mxu0 0.0
    %315 = vmatpush1.msra.mxu0 0.0
    %316 = vmatprep.subr.mxu0 0.0
    %317 = vmatpush1.msra.mxu0 0.0
    %318 = vmatprep.subr.mxu0 0.0
    %319 = vmatpush1.msra.mxu0 0.0
    %320 = vmatprep.subr.mxu0 0.0
    %321 = vmatpush1.msra.mxu0 0.0
    %322 = vmatprep.subr.mxu0 0.0
    %323 = vmatpush1.msra.mxu0 0.0
    %324 = vmatprep.subr.mxu0 0.0
    %325 = vmatpush1.msra.mxu0 0.0
    %326 = vmatprep.mubr.f32.mxu0 %v209
    %327 = vmatmul.mubr.f32.gmra.mrb[0].mxu0 %v63
    %v328 = vpop.f32.mrb[0].mxu0
    %v329 = vadd.f32 %v120, %v328
    %v330 = vpop.f32.mrb[0].mxu0
    %331 = vmatprep.mubr.f32.mxu0 %v212
    %332 = vmatmul.mubr.f32.gmra.mrb[0].mxu0 %v65
    %v333 = vpop.f32.mrb[0].mxu0
    %v334 = vadd.f32 %v125, %v333
    %v335 = vpop.f32.mrb[0].mxu0
    %336 = vmatprep.mubr.f32.mxu0 %v215
    %337 = vmatmul.mubr.f32.gmra.mrb[0].mxu0 %v67
    %v338 = vpop.f32.mrb[0].mxu0
    %v339 = vadd.f32 %v130, %v338
    %v340 = vpop.f32.mrb[0].mxu0
    %341 = vmatprep.mubr.f32.mxu0 %v218
    %342 = vmatmul.mubr.f32.gmra.mrb[0].mxu0 %v69
    %v343 = vpop.f32.mrb[0].mxu0
    %v344 = vadd.f32 %v135, %v343
    %v345 = vpop.f32.mrb[0].mxu0
    %346 = vmatprep.mubr.f32.mxu0 %v221
    %347 = vmatmul.mubr.f32.gmra.mrb[0].mxu0 %v71
    %v348 = vpop.f32.mrb[0].mxu0
    %v349 = vadd.f32 %v140, %v348
    %v350 = vpop.f32.mrb[0].mxu0
    %351 = vmatprep.mubr.f32.mxu0 %v224
    %352 = vmatmul.mubr.f32.gmra.mrb[0].mxu0 %v73
    %v353 = vpop.f32.mrb[0].mxu0
    %v354 = vadd.f32 %v145, %v353
    %v355 = vpop.f32.mrb[0].mxu0
    %356 = vmatprep.mubr.f32.mxu0 %v227
    %357 = vmatmul.mubr.f32.gmra.mrb[0].mxu0 %v75
    %v358 = vpop.f32.mrb[0].mxu0
    %v359 = vadd.f32 %v150, %v358
    %v360 = vpop.f32.mrb[0].mxu0
    %361 = vmatprep.mubr.f32.mxu0 %v230
    %362 = vmatmul.mubr.f32.gmra.mrb[0].mxu0 %v77
    %v363 = vpop.f32.mrb[0].mxu0
    %v364 = vadd.f32 %v155, %v363
    %v365 = vpop.f32.mrb[0].mxu0
    %366 = vmatprep.mubr.f32.mxu0 %v233
    %367 = vmatmul.mubr.f32.gmra.mrb[0].mxu0 %v79
    %v368 = vpop.f32.mrb[0].mxu0
    %v369 = vadd.f32 %v160, %v368
    %v370 = vpop.f32.mrb[0].mxu0
    %371 = vmatprep.mubr.f32.mxu0 %v236
    %372 = vmatmul.mubr.f32.gmra.mrb[0].mxu0 %v81
    %v373 = vpop.f32.mrb[0].mxu0
    %v374 = vadd.f32 %v165, %v373
    %v375 = vpop.f32.mrb[0].mxu0
    %376 = vmatprep.mubr.f32.mxu0 %v239
    %377 = vmatmul.mubr.f32.gmra.mrb[0].mxu0 %v83
    %v378 = vpop.f32.mrb[0].mxu0
    %v379 = vadd.f32 %v170, %v378
    %v380 = vpop.f32.mrb[0].mxu0
    %381 = vmatprep.mubr.f32.mxu0 %v242
    %382 = vmatmul.mubr.f32.gmra.mrb[0].mxu0 %v85
    %v383 = vpop.f32.mrb[0].mxu0
    %v384 = vadd.f32 %v175, %v383
    %v385 = vpop.f32.mrb[0].mxu0
    %386 = vmatprep.mubr.f32.mxu0 %v245
    %387 = vmatmul.mubr.f32.gmra.mrb[0].mxu0 %v87
    %v388 = vpop.f32.mrb[0].mxu0
    %v389 = vadd.f32 %v180, %v388
    %v390 = vpop.f32.mrb[0].mxu0
    %391 = vmatprep.mubr.f32.mxu0 %v248
    %392 = vmatmul.mubr.f32.gmra.mrb[0].mxu0 %v89
    %v393 = vpop.f32.mrb[0].mxu0
    %v394 = vadd.f32 %v185, %v393
    %v395 = vpop.f32.mrb[0].mxu0
    %396 = vmatprep.mubr.f32.mxu0 %v251
    %397 = vmatmul.mubr.f32.gmra.mrb[0].mxu0 %v91
    %v398 = vpop.f32.mrb[0].mxu0
    %v399 = vadd.f32 %v190, %v398
    %v400 = vpop.f32.mrb[0].mxu0
    %401 = vmatprep.mubr.f32.mxu0 %v254
    %402 = vmatmul.mubr.f32.gmra.mrb[0].mxu0 %v93
    %v403 = vpop.f32.mrb[0].mxu0
    %v404 = vadd.f32 %v195, %v403
    %v405 = vpop.f32.mrb[0].mxu0
    %406 = vmatprep.mubr.f32.mxu0 %v257
    %407 = vmatmul.mubr.f32.gmra.mrb[0].mxu0 %v95
    %v408 = vpop.f32.mrb[0].mxu0
    %v409 = vadd.f32 %v200, %v408
    %v410 = vpop.f32.mrb[0].mxu0
    %411 = vmatprep.mubr.f32.mxu0 %v260
    %412 = vmatmul.mubr.f32.gmra.mrb[0].mxu0 %v97
    %v413 = vpop.f32.mrb[0].mxu0
    %v414 = vadd.f32 %v205, %v413
    %v415 = vpop.f32.mrb[0].mxu0
    %416 = vdwg.mxu0
    %v417 = vtanh.pop %v329
    %v418 = vtanh.pop %v334
    %v419 = vtanh.pop %v339
    %v420 = vtanh.pop %v344
    %v421 = vtanh.pop %v349
    %v422 = vtanh.pop %v354
    %v423 = vtanh.pop %v359
    %v424 = vtanh.pop %v364
    %v425 = vtanh.pop %v369
    %v426 = vtanh.pop %v374
    %v427 = vtanh.pop %v379
    %v428 = vtanh.pop %v384
    %v429 = vtanh.pop %v389
    %v430 = vtanh.pop %v394
    %v431 = vtanh.pop %v399
    %v432 = vtanh.pop %v404
    %v433 = vtanh.pop %v409
    %v434 = vtanh.pop %v414
    %v435 = vmul.f32 %v417, %v426
    %v436 = vmul.f32 %v418, %v427
    %v437 = vmul.f32 %v419, %v428
    %v438 = vmul.f32 %v420, %v429
    %v439 = vmul.f32 %v421, %v430
    %v440 = vmul.f32 %v422, %v431
    %v441 = vmul.f32 %v423, %v432
    %v442 = vmul.f32 %v424, %v433
    %v443 = vmul.f32 %v425, %v434
    %v444 = vld [vmem:[%s3] sm:$0xff]
    %v445 = vld [vmem:[%s3 + $0x8] sm:$0xff]
    %v446 = vld [vmem:[%s3 + $0x10] sm:$0xff]
    %v447 = vld [vmem:[%s3 + $0x18] sm:$0xff]
    %449 = vset.pattern.permute.xlu0 0
    %450 = vperm.xlu0 %449, %v56
    %v451 = vpop.permute.xlu0 %450
    %454 = vset.pattern.permute.xlu0 0
    %455 = vperm.xlu0 %454, %v57
    %v456 = vpop.permute.xlu0 %455
    %459 = vset.pattern.permute.xlu0 0
    %460 = vperm.xlu0 %459, %v58
    %v461 = vpop.permute.xlu0 %460
    %464 = vset.pattern.permute.xlu0 0
    %465 = vperm.xlu0 %464, %v59
    %v466 = vpop.permute.xlu0 %465
    %vm468 = vcmask 588800
    %v470 = vsel %vm468, %v444, 0
    %v473 = vsel %vm468, %v445, 0
    %v476 = vsel %vm468, %v446, 0
    %v479 = vsel %vm468, %v447, 0
    %481 = vmatprep.subr.mxu0 0.0
    %482 = vmatpush1.msra.mxu0 %v435
    %483 = vmatprep.subr.mxu0 0.0
    %484 = vmatpush1.msra.mxu0 %v436
    %485 = vmatprep.subr.mxu0 0.0
    %486 = vmatpush1.msra.mxu0 %v437
    %487 = vmatprep.subr.mxu0 0.0
    %488 = vmatpush1.msra.mxu0 %v438
    %489 = vmatprep.subr.mxu0 0.0
    %490 = vmatpush1.msra.mxu0 %v439
    %491 = vmatprep.subr.mxu0 0.0
    %492 = vmatpush1.msra.mxu0 %v440
    %493 = vmatprep.subr.mxu0 0.0
    %494 = vmatpush1.msra.mxu0 %v441
    %495 = vmatprep.subr.mxu0 0.0
    %496 = vmatpush1.msra.mxu0 %v442
    %497 = vmatprep.subr.mxu0 0.0
    %498 = vmatpush1.msra.mxu0 %v443
    %499 = vmatprep.subr.mxu0 0.0
    %500 = vmatpush1.msra.mxu0 0.0
    %501 = vmatprep.subr.mxu0 0.0
    %502 = vmatpush1.msra.mxu0 0.0
    %503 = vmatprep.subr.mxu0 0.0
    %504 = vmatpush1.msra.mxu0 0.0
    %505 = vmatprep.subr.mxu0 0.0
    %506 = vmatpush1.msra.mxu0 0.0
    %507 = vmatprep.subr.mxu0 0.0
    %508 = vmatpush1.msra.mxu0 0.0
    %509 = vmatprep.subr.mxu0 0.0
    %510 = vmatpush1.msra.mxu0 0.0
    %511 = vmatprep.subr.mxu0 0.0
    %512 = vmatpush1.msra.mxu0 0.0
    %513 = vmatprep.subr.mxu0 0.0
    %514 = vmatpush1.msra.mxu0 0.0
    %515 = vmatprep.subr.mxu0 0.0
    %516 = vmatpush1.msra.mxu0 0.0
    %517 = vmatprep.subr.mxu0 0.0
    %518 = vmatpush1.msra.mxu0 0.0
    %519 = vmatprep.subr.mxu0 0.0
    %520 = vmatpush1.msra.mxu0 0.0
    %521 = vmatprep.subr.mxu0 0.0
    %522 = vmatpush1.msra.mxu0 0.0
    %523 = vmatprep.subr.mxu0 0.0
    %524 = vmatpush1.msra.mxu0 0.0
    %525 = vmatprep.subr.mxu0 0.0
    %526 = vmatpush1.msra.mxu0 0.0
    %527 = vmatprep.subr.mxu0 0.0
    %528 = vmatpush1.msra.mxu0 0.0
    %529 = vmatprep.subr.mxu0 0.0
    %530 = vmatpush1.msra.mxu0 0.0
    %531 = vmatprep.subr.mxu0 0.0
    %532 = vmatpush1.msra.mxu0 0.0
    %533 = vmatprep.subr.mxu0 0.0
    %534 = vmatpush1.msra.mxu0 0.0
    %535 = vmatprep.subr.mxu0 0.0
    %536 = vmatpush1.msra.mxu0 0.0
    %537 = vmatprep.subr.mxu0 0.0
    %538 = vmatpush1.msra.mxu0 0.0
    %539 = vmatprep.subr.mxu0 0.0
    %540 = vmatpush1.msra.mxu0 0.0
    %541 = vmatprep.subr.mxu0 0.0
    %542 = vmatpush1.msra.mxu0 0.0
    %543 = vmatprep.subr.mxu0 0.0
    %544 = vmatpush1.msra.mxu0 0.0
    %545 = vmatprep.mubr.f32.mxu0 0.0
    %546 = vmatmul.mubr.f32.gmra.mrb[0].mxu0 %v470
    %v547 = vpop.f32.mrb[0].mxu0
    %v548 = vadd.f32 %v451, %v547
    %v549 = vpop.f32.mrb[0].mxu0
    %550 = vmatprep.mubr.f32.mxu0 0.0
    %551 = vmatmul.mubr.f32.gmra.mrb[0].mxu0 %v473
    %v552 = vpop.f32.mrb[0].mxu0
    %v553 = vadd.f32 %v456, %v552
    %v554 = vpop.f32.mrb[0].mxu0
    %555 = vmatprep.mubr.f32.mxu0 0.0
    %556 = vmatmul.mubr.f32.gmra.mrb[0].mxu0 %v476
    %v557 = vpop.f32.mrb[0].mxu0
    %v558 = vadd.f32 %v461, %v557
    %v559 = vpop.f32.mrb[0].mxu0
    %560 = vmatprep.mubr.f32.mxu0 0.0
    %561 = vmatmul.mubr.f32.gmra.mrb[0].mxu0 %v479
    %v562 = vpop.f32.mrb[0].mxu0
    %v563 = vadd.f32 %v466, %v562
    %v564 = vpop.f32.mrb[0].mxu0
    %565 = vdwg.mxu0
    %v566 = vmax.f32 %v548, 0.0
    %v567 = vmax.f32 %v553, 0.0
    %v568 = vmax.f32 %v558, 0.0
    %v569 = vmax.f32 %v563, 0.0
    %v570 = vld [vmem:[%s4] sm:$0xff]
    %v571 = vld [vmem:[%s4 + $0x8] sm:$0xff]
    %573 = vset.pattern.permute.xlu0 0
    %574 = vperm.xlu0 %573, %v60
    %v575 = vpop.permute.xlu0 %574
    %578 = vset.pattern.permute.xlu0 0
    %579 = vperm.xlu0 %578, %v61
    %v580 = vpop.permute.xlu0 %579
    %vm582 = vcmask 261120
    %v584 = vsel %vm582, %v570, 0
    %v587 = vsel %vm582, %v571, 0
    %589 = vmatprep.subr.mxu0 0.0
    %590 = vmatpush1.msra.mxu0 %v566
    %591 = vmatprep.subr.mxu0 0.0
    %592 = vmatpush1.msra.mxu0 %v567
    %593 = vmatprep.subr.mxu0 0.0
    %594 = vmatpush1.msra.mxu0 %v568
    %595 = vmatprep.subr.mxu0 0.0
    %596 = vmatpush1.msra.mxu0 %v569
    %597 = vmatprep.subr.mxu0 0.0
    %598 = vmatpush1.msra.mxu0 0.0
    %599 = vmatprep.subr.mxu0 0.0
    %600 = vmatpush1.msra.mxu0 0.0
    %601 = vmatprep.subr.mxu0 0.0
    %602 = vmatpush1.msra.mxu0 0.0
    %603 = vmatprep.subr.mxu0 0.0
    %604 = vmatpush1.msra.mxu0 0.0
    %605 = vmatprep.subr.mxu0 0.0
    %606 = vmatpush1.msra.mxu0 0.0
    %607 = vmatprep.subr.mxu0 0.0
    %608 = vmatpush1.msra.mxu0 0.0
    %609 = vmatprep.subr.mxu0 0.0
    %610 = vmatpush1.msra.mxu0 0.0
    %611 = vmatprep.subr.mxu0 0.0
    %612 = vmatpush1.msra.mxu0 0.0
    %613 = vmatprep.subr.mxu0 0.0
    %614 = vmatpush1.msra.mxu0 0.0
    %615 = vmatprep.subr.mxu0 0.0
    %616 = vmatpush1.msra.mxu0 0.0
    %617 = vmatprep.subr.mxu0 0.0
    %618 = vmatpush1.msra.mxu0 0.0
    %619 = vmatprep.subr.mxu0 0.0
    %620 = vmatpush1.msra.mxu0 0.0
    %621 = vmatprep.subr.mxu0 0.0
    %622 = vmatpush1.msra.mxu0 0.0
    %623 = vmatprep.subr.mxu0 0.0
    %624 = vmatpush1.msra.mxu0 0.0
    %625 = vmatprep.subr.mxu0 0.0
    %626 = vmatpush1.msra.mxu0 0.0
    %627 = vmatprep.subr.mxu0 0.0
    %628 = vmatpush1.msra.mxu0 0.0
    %629 = vmatprep.subr.mxu0 0.0
    %630 = vmatpush1.msra.mxu0 0.0
    %631 = vmatprep.subr.mxu0 0.0
    %632 = vmatpush1.msra.mxu0 0.0
    %633 = vmatprep.subr.mxu0 0.0
    %634 = vmatpush1.msra.mxu0 0.0
    %635 = vmatprep.subr.mxu0 0.0
    %636 = vmatpush1.msra.mxu0 0.0
    %637 = vmatprep.subr.mxu0 0.0
    %638 = vmatpush1.msra.mxu0 0.0
    %639 = vmatprep.subr.mxu0 0.0
    %640 = vmatpush1.msra.mxu0 0.0
    %641 = vmatprep.subr.mxu0 0.0
    %642 = vmatpush1.msra.mxu0 0.0
    %643 = vmatprep.subr.mxu0 0.0
    %644 = vmatpush1.msra.mxu0 0.0
    %645 = vmatprep.subr.mxu0 0.0
    %646 = vmatpush1.msra.mxu0 0.0
    %647 = vmatprep.subr.mxu0 0.0
    %648 = vmatpush1.msra.mxu0 0.0
    %649 = vmatprep.subr.mxu0 0.0
    %650 = vmatpush1.msra.mxu0 0.0
    %651 = vmatprep.subr.mxu0 0.0
    %652 = vmatpush1.msra.mxu0 0.0
    %653 = vmatprep.mubr.f32.mxu0 0.0
    %654 = vmatmul.mubr.f32.gmra.mrb[0].mxu0 %v584
    %v655 = vpop.f32.mrb[0].mxu0
    %v656 = vadd.f32 %v575, %v655
    %v657 = vpop.f32.mrb[0].mxu0
    %658 = vmatprep.mubr.f32.mxu0 0.0
    %659 = vmatmul.mubr.f32.gmra.mrb[0].mxu0 %v587
    %v660 = vpop.f32.mrb[0].mxu0
    %v661 = vadd.f32 %v580, %v660
    %v662 = vpop.f32.mrb[0].mxu0
    %663 = vdwg.mxu0
    %v664 = vmax.f32 %v656, 0.0
    %v665 = vmax.f32 %v661, 0.0
    %v666 = vld [vmem:[%s5] sm:$0x7]
    %668 = vset.pattern.permute.xlu0 0
    %669 = vperm.xlu0 %668, %v62
    %v670 = vpop.permute.xlu0 %669
    %v673 = vsel %vm207, %v666, 0
    %675 = vmatprep.subr.mxu0 0.0
    %676 = vmatpush1.msra.mxu0 %v664
    %677 = vmatprep.subr.mxu0 0.0
    %678 = vmatpush1.msra.mxu0 %v665
    %679 = vmatprep.subr.mxu0 0.0
    %680 = vmatpush1.msra.mxu0 0.0
    %681 = vmatprep.subr.mxu0 0.0
    %682 = vmatpush1.msra.mxu0 0.0
    %683 = vmatprep.subr.mxu0 0.0
    %684 = vmatpush1.msra.mxu0 0.0
    %685 = vmatprep.subr.mxu0 0.0
    %686 = vmatpush1.msra.mxu0 0.0
    %687 = vmatprep.subr.mxu0 0.0
    %688 = vmatpush1.msra.mxu0 0.0
    %689 = vmatprep.subr.mxu0 0.0
    %690 = vmatpush1.msra.mxu0 0.0
    %691 = vmatprep.subr.mxu0 0.0
    %692 = vmatpush1.msra.mxu0 0.0
    %693 = vmatprep.subr.mxu0 0.0
    %694 = vmatpush1.msra.mxu0 0.0
    %695 = vmatprep.subr.mxu0 0.0
    %696 = vmatpush1.msra.mxu0 0.0
    %697 = vmatprep.subr.mxu0 0.0
    %698 = vmatpush1.msra.mxu0 0.0
    %699 = vmatprep.subr.mxu0 0.0
    %700 = vmatpush1.msra.mxu0 0.0
    %701 = vmatprep.subr.mxu0 0.0
    %702 = vmatpush1.msra.mxu0 0.0
    %703 = vmatprep.subr.mxu0 0.0
    %704 = vmatpush1.msra.mxu0 0.0
    %705 = vmatprep.subr.mxu0 0.0
    %706 = vmatpush1.msra.mxu0 0.0
    %707 = vmatprep.subr.mxu0 0.0
    %708 = vmatpush1.msra.mxu0 0.0
    %709 = vmatprep.subr.mxu0 0.0
    %710 = vmatpush1.msra.mxu0 0.0
    %711 = vmatprep.subr.mxu0 0.0
    %712 = vmatpush1.msra.mxu0 0.0
    %713 = vmatprep.subr.mxu0 0.0
    %714 = vmatpush1.msra.mxu0 0.0
    %715 = vmatprep.subr.mxu0 0.0
    %716 = vmatpush1.msra.mxu0 0.0
    %717 = vmatprep.subr.mxu0 0.0
    %718 = vmatpush1.msra.mxu0 0.0
    %719 = vmatprep.subr.mxu0 0.0
    %720 = vmatpush1.msra.mxu0 0.0
    %721 = vmatprep.subr.mxu0 0.0
    %722 = vmatpush1.msra.mxu0 0.0
    %723 = vmatprep.subr.mxu0 0.0
    %724 = vmatpush1.msra.mxu0 0.0
    %725 = vmatprep.subr.mxu0 0.0
    %726 = vmatpush1.msra.mxu0 0.0
    %727 = vmatprep.subr.mxu0 0.0
    %728 = vmatpush1.msra.mxu0 0.0
    %729 = vmatprep.subr.mxu0 0.0
    %730 = vmatpush1.msra.mxu0 0.0
    %731 = vmatprep.subr.mxu0 0.0
    %732 = vmatpush1.msra.mxu0 0.0
    %733 = vmatprep.subr.mxu0 0.0
    %734 = vmatpush1.msra.mxu0 0.0
    %735 = vmatprep.subr.mxu0 0.0
    %736 = vmatpush1.msra.mxu0 0.0
    %737 = vmatprep.subr.mxu0 0.0
    %738 = vmatpush1.msra.mxu0 0.0
    %739 = vmatprep.mubr.f32.mxu0 0.0
    %740 = vmatmul.mubr.f32.gmra.mrb[0].mxu0 %v673
    %v741 = vpop.f32.mrb[0].mxu0
    %v742 = vadd.f32 %v670, %v741
    %v743 = vpop.f32.mrb[0].mxu0
    %744 = vdwg.mxu0
    %745 = vst [vmem:[#allocation5] sm:$0x7] %v742
    // Predicated region
    $region30: #{tpu_custom_call.1} parent=1 // pred_check
      _
    $region31: #{tpu_custom_call.1} parent=1 // pred_check_branch
      %747 = sbr.rel (0) target = $region33
    $region32: #{tpu_custom_call.1} parent=1 // pred_region
      %s749 = ssub.s32 64, 64
      %750 = vsyncadd [#allocation4], %s749
      %s752 = sshll.u32 [#allocation5], 4
      %s753 = int_to_ptr.vmem [resolvable:$true] %s752
      %755 = dma.vmem_to_hbm [thread:$0]  %s753, 64, %s6, [#allocation4]
    $region33: #{tpu_custom_call.1} parent=1 // pred_fallthru
      _
    // Predicated region
    $region34: #{tpu_custom_call.1} parent=1 // pred_check
      _
    $region35: #{tpu_custom_call.1} parent=1 // pred_check_branch
      %757 = sbr.rel (0) target = $region37
    $region36: #{tpu_custom_call.1} parent=1 // pred_region
      %758 = dma.done [#allocation4], 64
    $region37: #{tpu_custom_call.1} parent=1 // pred_fallthru
      _
    %759 = vsyncpa [#allocation3], 1
    %760 = vsyncpa [#allocation4], 1

</llo_original>
